<compile_context>
chip_gen: v7x
topology: tpu7x:2x2x1
jax: 0.10.0
libtpu: 0.0.40
codegen_flags: <defaults>
</compile_context>

<pallas_src>
import math
import functools

import jax
import jax.numpy as jnp
from jax.experimental import pallas as pl
from jax.experimental.pallas import tpu as pltpu


def _pair(v):
    return (v, v) if isinstance(v, int) else tuple(v)


# ----------------------------- tiling policy ------------------------------

_LANE = 128
_SUBLANE_BY_ITEMSIZE = {4: 8, 2: 16, 1: 32}      # dtype itemsize -> sublane tile
_TILE_BYTES_TARGET = 3 * 1024 * 1024             # (in + out) tile bytes per grid step
_MIN_GRID_STEPS = 8                              # pipeline overlap + both v7x TCs busy
_VMEM_LIMIT_BYTES = 24 * 1024 * 1024             # small tiles -> modest scoped limit


def _round_up(v, m):
    return ((v + m - 1) // m) * m


def _padded_channel_bytes(h, w, h_out, w_out, dtype):
    """VMEM bytes for one (in + out) channel, including (sublane, 128) tile padding."""
    itemsize = jnp.dtype(dtype).itemsize
    sub = _SUBLANE_BY_ITEMSIZE.get(itemsize, 8)
    in_b = _round_up(h, sub) * _round_up(w, _LANE) * itemsize
    out_b = _round_up(h_out, sub) * _round_up(w_out, _LANE) * itemsize
    return in_b + out_b


def _choose_block_channels(nc, h, w, h_out, w_out, dtype):
    per_channel = _padded_channel_bytes(h, w, h_out, w_out, dtype)
    # Target ~3 MiB of (in+out) tile per step (HBM roofline already saturates
    # well below this); double-buffered that is ~6 MiB of VMEM.
    max_bc = max(1, _TILE_BYTES_TARGET // per_channel)
    # Prefer >= _MIN_GRID_STEPS grid steps so the pipeline overlaps input
    # prefetch with output writeback and v7x's two TensorCores share the work.
    if nc >= _MIN_GRID_STEPS:
        max_bc = min(max_bc, pl.cdiv(nc, _MIN_GRID_STEPS))
    bc = int(min(nc, max_bc))
    # Prefer a bc that divides NC (avoids a partial, write-masked last block)
    # if one exists within 2x of the target size; otherwise the partial block
    # is still correct (Pallas masks OOB writes) — just slightly less tidy.
    for cand in range(bc, max(bc // 2, 1) - 1, -1):
        if nc % cand == 0:
            return cand
    return bc


# -------------------------------- kernel ----------------------------------

def _same_pad_kernel(x_ref, o_ref, *, pad_top, pad_bottom, pad_left, pad_right):
    """Pad one (bc, H, W) block to (bc, H_out, W_out) with zeros.

    All pad amounts are static Python ints, so every slice below is static and
    each output element is written exactly once.
    """
    bc, h, w = x_ref.shape
    w_out = o_ref.shape[2]

    # Top / bottom halo rows: full-lane-width zero strips (unmasked stores).
    if pad_top > 0:
        o_ref[:, :pad_top, :] = jnp.zeros((bc, pad_top, w_out), o_ref.dtype)
    if pad_bottom > 0:
        o_ref[:, pad_top + h:, :] = jnp.zeros((bc, pad_bottom, w_out), o_ref.dtype)

    if pad_left == 0:
        # Lane-aligned interior store; only a (possibly empty) right halo strip.
        o_ref[:, pad_top:pad_top + h, :w] = x_ref[...]
        if pad_right > 0:
            o_ref[:, pad_top:pad_top + h, w:] = jnp.zeros((bc, h, pad_right),
                                                          o_ref.dtype)
    else:
        # Lane-offset interior: compose the width-padded rows in registers
        # (equivalent to jnp.pad along W) and issue ONE full-lane-width store.
        # This avoids the masked narrow vst.msk codegen of 1-lane halo strips
        # and a lane-offset interior store; the VPU/XLU work to build the
        # padded rows hides under DMA in this memory-bound kernel.
        parts = [jnp.zeros((bc, h, pad_left), o_ref.dtype), x_ref[...]]
        if pad_right > 0:
            parts.append(jnp.zeros((bc, h, pad_right), o_ref.dtype))
        row_block = jnp.concatenate(parts, axis=2)
        o_ref[:, pad_top:pad_top + h, :] = row_block


# ------------------------------- wrapper -----------------------------------

def same_pad2d(x, kernel_size, stride):
    """Pallas implementation of SamePad2d.forward for NCHW input x."""
    kernel_size = _pair(kernel_size)
    stride = _pair(stride)

    N, C, H, W = x.shape

    # Exactly mirror the PyTorch module's arithmetic (including its
    # width/height naming of size(2)/size(3) and the absence of max(.., 0)).
    in_width = H          # input.size()[2]
    in_height = W         # input.size()[3]
    out_width = math.ceil(float(in_width) / float(stride[0]))
    out_height = math.ceil(float(in_height) / float(stride[1]))
    pad_along_width = (out_width - 1) * stride[0] + kernel_size[0] - in_width
    pad_along_height = (out_height - 1) * stride[1] + kernel_size[1] - in_height
    pad_left = int(math.floor(pad_along_width / 2))
    pad_top = int(math.floor(pad_along_height / 2))
    pad_right = pad_along_width - pad_left
    pad_bottom = pad_along_height - pad_top

    # F.pad(x, (l, r, t, b)): last dim (W) gets (l, r); dim 2 (H) gets (t, b).
    # Negative amounts crop (torch semantics); do the crops in the wrapper.
    crop_left, pad_left = max(-pad_left, 0), max(pad_left, 0)
    crop_right, pad_right = max(-pad_right, 0), max(pad_right, 0)
    crop_top, pad_top = max(-pad_top, 0), max(pad_top, 0)
    crop_bottom, pad_bottom = max(-pad_bottom, 0), max(pad_bottom, 0)
    if crop_left or crop_right:
        x = x[:, :, :, crop_left:W - crop_right]
    if crop_top or crop_bottom:
        x = x[:, :, crop_top:H - crop_bottom, :]
    N, C, H, W = x.shape

    # Early return: no padding to apply -> skip the HBM round trip entirely.
    if pad_left == 0 and pad_right == 0 and pad_top == 0 and pad_bottom == 0:
        return x

    H_out = H + pad_top + pad_bottom
    W_out = W + pad_left + pad_right

    # Collapse (N, C) into one flat axis (metadata-only reshape) and block it.
    NC = N * C
    x_flat = x.reshape(NC, H, W)

    bc = _choose_block_channels(NC, H, W, H_out, W_out, x.dtype)
    grid = (pl.cdiv(NC, bc),)

    kernel = functools.partial(
        _same_pad_kernel,
        pad_top=pad_top, pad_bottom=pad_bottom,
        pad_left=pad_left, pad_right=pad_right)

    itemsize = jnp.dtype(x.dtype).itemsize
    bytes_accessed = NC * (H * W + H_out * W_out) * itemsize
    # Double-buffered (in+out) tile + slack; never below the 24 MiB default.
    tile_bytes = bc * _padded_channel_bytes(H, W, H_out, W_out, x.dtype)
    vmem_limit = max(_VMEM_LIMIT_BYTES, 2 * tile_bytes + (2 << 20))

    out_flat = pl.pallas_call(
        kernel,
        out_shape=jax.ShapeDtypeStruct((NC, H_out, W_out), x.dtype),
        grid_spec=pltpu.PrefetchScalarGridSpec(
            num_scalar_prefetch=0,
            grid=grid,
            # TODO(synk): if profiling shows exposed input DMA, try
            # pipeline_mode=pl.Buffered(3) on the input spec (VMEM headroom
            # permitting — tight on v7x's 64 MiB).
            in_specs=[
                pl.BlockSpec((bc, H, W), lambda i: (i, 0, 0)),
            ],
            out_specs=pl.BlockSpec((bc, H_out, W_out), lambda i: (i, 0, 0)),
        ),
        compiler_params=pltpu.CompilerParams(
            # TODO(synk): on v7x, verify both TensorCores get grid steps under
            # "parallel"; otherwise switch to CORE_PARALLEL / pl.core_map.
            dimension_semantics=("parallel",),
            vmem_limit_bytes=int(vmem_limit),
        ),
        cost_estimate=pl.CostEstimate(
            flops=0, transcendentals=0, bytes_accessed=int(bytes_accessed)),
    )(x_flat)

    return out_flat.reshape(N, C, H_out, W_out)


# ----------------------------- reference (test) ----------------------------

def _torch_like_reference(x, kernel_size, stride):
    """Pure-JAX replica of SamePad2d.forward (F.pad semantics, incl. crops)."""
    ks, st = _pair(kernel_size), _pair(stride)
    N, C, H, W = x.shape
    in_width, in_height = H, W
    out_width = math.ceil(float(in_width) / float(st[0]))
    out_height = math.ceil(float(in_height) / float(st[1]))
    paw = (out_width - 1) * st[0] + ks[0] - in_width
    pah = (out_height - 1) * st[1] + ks[1] - in_height
    p_l = int(math.floor(paw / 2)); p_r = paw - p_l
    p_t = int(math.floor(pah / 2)); p_b = pah - p_t

    def crop_pad(a, axis, lo, hi):
        n = a.shape[axis]
        idx = [slice(None)] * a.ndim
        idx[axis] = slice(max(-lo, 0), n - max(-hi, 0))
        a = a[tuple(idx)]
        widths = [(0, 0)] * a.ndim
        widths[axis] = (max(lo, 0), max(hi, 0))
        return jnp.pad(a, widths)

    # (l, r) on last dim, (t, b) on dim 2 — exactly like F.pad.
    return crop_pad(crop_pad(x, 3, p_l, p_r), 2, p_t, p_b)


if __name__ == "__main__":
    key = jax.random.PRNGKey(0)
    x = jax.random.normal(key, (2, 4, 16, 16), dtype=jnp.float32)

    configs = [
        (3, 2),            # pad_left == 0 path (right/bottom halo only)
        (3, 1),            # canonical Mask R-CNN SamePad2d(3,1): pad 1 all around
        ((1, 3), (2, 1)),  # negative pad (crop) on one axis, H-only pad on other
        (1, 1),            # zero padding -> early return, no kernel launch
    ]
    for ks, st in configs:
        y = jax.block_until_ready(same_pad2d(x, ks, st))
        ref = _torch_like_reference(x, ks, st)
        assert y.shape == ref.shape, (ks, st, y.shape, ref.shape)
        assert y.dtype == x.dtype, (ks, st, y.dtype)
        assert bool(jnp.all(y == ref)), (ks, st)

    print("KERNEL_OK")
</pallas_src>

<mosaic_0001>
module attributes {stable_mosaic.version = 11 : i64} {
  func.func @_same_pad_kernel(%arg0: i32, %arg1: memref<1x16x16xf32, #tpu.memory_space<vmem>>, %arg2: memref<1x17x17xf32, #tpu.memory_space<vmem>>) attributes {dimension_semantics = [#tpu.dimension_semantics<parallel>], iteration_bounds = array<i64: 8>, scalar_prefetch = 0 : i64, scratch_operands = 0 : i64, tpu.core_type = #tpu.core_type<tc>, window_params = [{transform_indices = @transform_0, window_bounds = array<i64: 1, 16, 16>}, {transform_indices = @transform_1, window_bounds = array<i64: 1, 17, 17>}]} {
    %cst = arith.constant 0.000000e+00 : f32
    %0 = vector.broadcast %cst : f32 to vector<1x1x17xf32>
    %c0 = arith.constant 0 : index
    %c16 = arith.constant 16 : index
    %c0_0 = arith.constant 0 : index
    %1 = vector.load %arg2[%c0, %c16, %c0_0] : memref<1x17x17xf32, #tpu.memory_space<vmem>>, vector<1x1x17xf32>
    tpu.vector_store %arg2[%c0, %c16, %c0_0], %0 {strides = array<i32>} : memref<1x17x17xf32, #tpu.memory_space<vmem>>, vector<1x1x17xf32>,
    %c0_1 = arith.constant 0 : index
    %c0_2 = arith.constant 0 : index
    %c0_3 = arith.constant 0 : index
    %2 = vector.load %arg1[%c0_1, %c0_2, %c0_3] : memref<1x16x16xf32, #tpu.memory_space<vmem>>, vector<1x16x16xf32>
    %c0_4 = arith.constant 0 : index
    %c0_5 = arith.constant 0 : index
    %c0_6 = arith.constant 0 : index
    %3 = vector.load %arg2[%c0_4, %c0_5, %c0_6] : memref<1x17x17xf32, #tpu.memory_space<vmem>>, vector<1x16x16xf32>
    tpu.vector_store %arg2[%c0_4, %c0_5, %c0_6], %2 {strides = array<i32>} : memref<1x17x17xf32, #tpu.memory_space<vmem>>, vector<1x16x16xf32>,
    %cst_7 = arith.constant 0.000000e+00 : f32
    %4 = vector.broadcast %cst_7 : f32 to vector<1x16x1xf32>
    %c0_8 = arith.constant 0 : index
    %c0_9 = arith.constant 0 : index
    %c16_10 = arith.constant 16 : index
    %5 = vector.load %arg2[%c0_8, %c0_9, %c16_10] : memref<1x17x17xf32, #tpu.memory_space<vmem>>, vector<1x16x1xf32>
    tpu.vector_store %arg2[%c0_8, %c0_9, %c16_10], %4 {strides = array<i32>} : memref<1x17x17xf32, #tpu.memory_space<vmem>>, vector<1x16x1xf32>,
    return
  }
  func.func @transform_0(%arg0: i32) -> (i32, i32, i32) {
    %c0_i32 = arith.constant 0 : i32
    %c0_i32_0 = arith.constant 0 : i32
    %c0_i32_1 = arith.constant 0 : i32
    return %arg0, %c0_i32, %c0_i32_0 : i32, i32, i32
  }
  func.func @transform_1(%arg0: i32) -> (i32, i32, i32) {
    %c0_i32 = arith.constant 0 : i32
    %c0_i32_0 = arith.constant 0 : i32
    %c0_i32_1 = arith.constant 0 : i32
    return %arg0, %c0_i32, %c0_i32_0 : i32, i32, i32
  }
}

</mosaic_0001>

<llo_original>
// kernel: tpu_custom_call.1
$region0: #{tpu_custom_call.1}
  #allocation0 [shape = 'u32[]', space=smem, size = 0x4, offset = 0x4, fixed_abs, tag = 'smem constant byte address 0x4 - core index']
  #allocation1 [shape = 'u32[144,128]{1,0:T(1,128)}', space=vmem, size = 0x12000, scoped, tag = 'internal scratch']
  %s0 = inlined_call_operand.hbm [shape: f32[8,16,16], index: 0, kind: input, shape index: {}]
  %s1 = inlined_call_operand.vmem [shape: f32[8,17,17], index: 1, kind: output, shape index: {}]
  %s2 = sld [smem:[#allocation0]]
  $region41: #{tpu_custom_call.1} parent=0
    _
  %s4 = ssub.s32 1, %s2
  %s5 = scalar_select 0, %s4, %s2
  $region1: #{tpu_custom_call.1} parent=0
    #allocation2 [shape = 'u8[16384]{0}', space=vmem, size = 0x4000, scoped, tag = 'input window, operand 0']
    #allocation3 [shape = 's32[2]{0}', space=sflag, size = 0x8, scoped, tag = 'scoped memory for tpu_custom_call.1']
    %6 = vsyncpa [#allocation3], 0
    %s7 = scalar_lea.sflag [#allocation3], 1
    %8 = vsyncpa %s7, 0
    loop: start=0, step=1, limit=10
    $region2: #{tpu_custom_call.1} parent=1 // loop_pre_header
      _
    $region3: #{tpu_custom_call.1} parent=1 // loop_header
      %s10 = sphi 0, %s14
      %p11 = scmp.ge.s32.totalorder %s10, 10
      %s20 = sphi 0, %s22
      %s23 = sphi 0, %s20
      %s24 = sphi 0, %s23
      %s40 = sphi 0, %s24
      %s46 = sphi 0, %s48
      %s49 = sphi 0, %s46
      %s50 = sphi 0, %s49
      %s66 = sphi 0, %s50
    $region4: #{tpu_custom_call.1} parent=1 // loop_header_branch
      %13 = sbr.rel (%p11) target = $region8
    $region5: #{tpu_custom_call.1} parent=1 // loop_body
      %s15 = ssub.s32 %s10, 1
      %s16 = ssub.s32 %s10, 2
      %s17 = sadd.s32 %s10, 1
      %s18 = ssub.s32 %s10, %s17
      %p19 = scmp.eq.s32.totalorder %s18, 0
      %s21 = sadd.s32 %s20, 1
      %s22 = scalar_select %p19, %s20, %s21
      %p25 = pneg %p19
      %p26 = scmp.eq.s32.totalorder %s10, 7
      %p27 = por %p25, %p26
      %p28 = scmp.ne.s32.totalorder %s20, %s23
      %p29 = scmp.eq.s32.totalorder %s10, 0
      %p30 = por %p28, %p29
      %p31 = scmp.ne.s32.totalorder %s20, %s23
      %p32 = scmp.eq.s32.totalorder %s15, 7
      %p33 = por %p31, %p32
      %p34 = scmp.ne.s32.totalorder %s23, %s24
      %p35 = scmp.eq.s32.totalorder %s15, 0
      %p36 = por %p34, %p35
      %p37 = scmp.ne.s32.totalorder %s23, %s24
      %p38 = scmp.eq.s32.totalorder %s16, 7
      %p39 = por %p37, %p38
      %p41 = scmp.ne.s32.totalorder %s24, %s40
      %p42 = scmp.eq.s32.totalorder %s16, 0
      %p43 = por %p41, %p42
      %s44 = ssub.s32 %s10, %s17
      %p45 = scmp.eq.s32.totalorder %s44, 0
      %s47 = sadd.s32 %s46, 1
      %s48 = scalar_select %p45, %s46, %s47
      %p51 = pneg %p45
      %p52 = scmp.eq.s32.totalorder %s10, 7
      %p53 = por %p51, %p52
      %p54 = scmp.ne.s32.totalorder %s46, %s49
      %p55 = scmp.eq.s32.totalorder %s10, 0
      %p56 = por %p54, %p55
      %p57 = scmp.ne.s32.totalorder %s46, %s49
      %p58 = scmp.eq.s32.totalorder %s15, 7
      %p59 = por %p57, %p58
      %p60 = scmp.ne.s32.totalorder %s49, %s50
      %p61 = scmp.eq.s32.totalorder %s15, 0
      %p62 = por %p60, %p61
      %p63 = scmp.ne.s32.totalorder %s49, %s50
      %p64 = scmp.eq.s32.totalorder %s16, 7
      %p65 = por %p63, %p64
      %p67 = scmp.ne.s32.totalorder %s50, %s66
      %p68 = scmp.eq.s32.totalorder %s16, 0
      %p69 = por %p67, %p68
      %p70 = scmp.le.s32.totalorder 1, %s10
      %p71 = scmp.lt.s32.totalorder %s10, 9
      %p72 = pnand %p70, %p71
      %p73 = pneg %p72
      // Predicated region
      $region9: #{tpu_custom_call.1} parent=5 // pred_check
        _
      $region10: #{tpu_custom_call.1} parent=5 // pred_check_branch
        %75 = sbr.rel (%p72) target = $region12
      $region11: #{tpu_custom_call.1} parent=5 // pred_region
        %s76 = ssub.s32 %s10, 1
      $region12: #{tpu_custom_call.1} parent=5 // pred_fallthru
        _
      %p77 = scmp.lt.s32.totalorder %s10, 8
      // Predicated region
      $region13: #{tpu_custom_call.1} parent=5 // pred_check
        %p78 = pneg %p77
      $region14: #{tpu_custom_call.1} parent=5 // pred_check_branch
        %80 = sbr.rel (%p78) target = $region16
      $region15: #{tpu_custom_call.1} parent=5 // pred_region
        // Predicated region
        $region17: #{tpu_custom_call.1} parent=15 // pred_check
          %p81 = pneg %p30
        $region18: #{tpu_custom_call.1} parent=15 // pred_check_branch
          %83 = sbr.rel (%p81) target = $region20
        $region19: #{tpu_custom_call.1} parent=15 // pred_region
          %s84 = sand.u32 %s20, 1
          %s85 = scalar_lea.sflag [#allocation3], %s84
          %s86 = sand.u32 %s20, 1
          %s87 = smul.addr %s86, 16
          %s88 = scalar_lea.vmem [#allocation2], %s87
          %s90 = ssub.s32 256, 256
          %91 = vsyncadd %s85, %s90
          %s92 = smul.addr %s10, 2
          %s93 = smul.addr %s92, 128
          %s94 = scalar_lea.hbm %s0, %s93
          %s95 = sshll.u32 %s88, 4
          %s96 = int_to_ptr.vmem [resolvable:$true] %s95
          %101 = dma.hbm_to_vmem [thread:$0]  %s94, 256, %s96, %s85, 128, 128, 8
        $region20: #{tpu_custom_call.1} parent=15 // pred_fallthru
          _
      $region16: #{tpu_custom_call.1} parent=5 // pred_fallthru
        _
      %p102 = scmp.le.s32.totalorder 1, %s10
      %p103 = scmp.lt.s32.totalorder %s10, 9
      %p104 = pnand %p102, %p103
      %p105 = pneg %p104
      // Predicated region
      $region21: #{tpu_custom_call.1} parent=5 // pred_check
        _
      $region22: #{tpu_custom_call.1} parent=5 // pred_check_branch
        %107 = sbr.rel (%p104) target = $region24
      $region23: #{tpu_custom_call.1} parent=5 // pred_region
        %s108 = ssub.s32 %s10, 1
        %s109 = sand.u32 %s23, 1
        %s110 = scalar_lea.sflag [#allocation3], %s109
        %s111 = sand.u32 %s23, 1
        %s112 = smul.addr %s111, 16
        %s113 = scalar_lea.vmem [#allocation2], %s112
        // Predicated region
        $region25: #{tpu_custom_call.1} parent=23 // pred_check
          %p114 = pneg %p36
        $region26: #{tpu_custom_call.1} parent=23 // pred_check_branch
          %116 = sbr.rel (%p114) target = $region28
        $region27: #{tpu_custom_call.1} parent=23 // pred_region
          %117 = dma.done %s110, 256
        $region28: #{tpu_custom_call.1} parent=23 // pred_fallthru
          _
        %s118 = sand.u32 %s23, 1
        %s119 = scalar_lea.sflag [#allocation3], %s118
        %s120 = sand.u32 %s23, 1
        %s121 = smul.addr %s120, 16
        %s122 = scalar_lea.vmem [#allocation2], %s121
        %p123 = pneg %p36
        %p124 = pneg %p33
        %p125 = pneg %p62
        %p126 = pneg %p59
        %p127 = scmp.lt.s32.totalorder %s15, 7
        %s128 = scalar_select %p127, %s15, 7
        %s129 = smul.addr %s128, 3
        %s130 = smul.addr %s129, 8
        %s131 = scalar_lea.vmem %s1, %s130
        %p132 = scmp.lt.s32.totalorder %s15, 7
        %s133 = scalar_select %p132, %s15, 7
        %s134 = smul.addr %s133, 3
        %s135 = smul.addr %s134, 8
        %s136 = scalar_lea.vmem %s1, %s135
        %vm137 = vcmask 131072
        %138 = vst.msk [vmem:[%s136 + $0x10] sm:$0x1] %vm137, 0.0
        %v139 = vld [vmem:[%s113] sm:$0xff]
        %v140 = vld [vmem:[%s113 + $0x8] sm:$0xff]
        %vm141 = vcmask 130048
        %142 = vst.msk [vmem:[%s136] sm:$0xff] %vm141, %v139
        %143 = vst.msk [vmem:[%s136 + $0x8] sm:$0xff] %vm141, %v140
        %vm144 = vcmask 138368
        %145 = vst.msk [vmem:[%s136] sm:$0xff] %vm144, 0.0
        %146 = vst.msk [vmem:[%s136 + $0x8] sm:$0xff] %vm144, 0.0
        %p147 = scmp.lt.s32.totalorder %s15, 7
        %s148 = scalar_select %p147, %s15, 7
        %s149 = smul.addr %s148, 3
        %s150 = smul.addr %s149, 8
        %s151 = scalar_lea.vmem %s1, %s150
        // Predicated region
        $region29: #{tpu_custom_call.1} parent=23 // pred_check
          %p152 = pneg %p59
        $region30: #{tpu_custom_call.1} parent=23 // pred_check_branch
          %154 = sbr.rel (%p152) target = $region32
        $region31: #{tpu_custom_call.1} parent=23 // pred_region
          _
        $region32: #{tpu_custom_call.1} parent=23 // pred_fallthru
          _
      $region24: #{tpu_custom_call.1} parent=5 // pred_fallthru
        _
      %p155 = scmp.le.s32.totalorder 2, %s10
      // Predicated region
      $region33: #{tpu_custom_call.1} parent=5 // pred_check
        %p156 = pneg %p155
      $region34: #{tpu_custom_call.1} parent=5 // pred_check_branch
        %158 = sbr.rel (%p156) target = $region36
      $region35: #{tpu_custom_call.1} parent=5 // pred_region
        %s159 = ssub.s32 %s10, 2
        // Predicated region
        $region37: #{tpu_custom_call.1} parent=35 // pred_check
          %p160 = pneg %p65
        $region38: #{tpu_custom_call.1} parent=35 // pred_check_branch
          %162 = sbr.rel (%p160) target = $region40
        $region39: #{tpu_custom_call.1} parent=35 // pred_region
          %p163 = scmp.lt.s32.totalorder %s16, 7
          %s164 = scalar_select %p163, %s16, 7
          %s165 = smul.addr %s164, 3
          %s166 = smul.addr %s165, 8
          %s167 = scalar_lea.vmem %s1, %s166
        $region40: #{tpu_custom_call.1} parent=35 // pred_fallthru
          _
      $region36: #{tpu_custom_call.1} parent=5 // pred_fallthru
        _
    $region6: #{tpu_custom_call.1} parent=1 // loop_footer
      %s14 = sadd.s32 1, %s10
    $region7: #{tpu_custom_call.1} parent=1 // loop_footer_branch
      %9 = sbr.rel target = $region3
    $region8: #{tpu_custom_call.1} parent=1 // loop_exit
      _
    %168 = vsyncpa [#allocation3], 1
    %s169 = scalar_lea.sflag [#allocation3], 1
    %170 = vsyncpa %s169, 1

</llo_original>
